<compile_context>
chip_gen: v7x
topology: tpu7x:2x2x1
jax: 0.10.0
libtpu: 0.0.40
codegen_flags: <defaults>
</compile_context>

<pallas_src>
import functools

import numpy as np
import jax
import jax.numpy as jnp
from jax.experimental import pallas as pl
from jax.experimental.pallas import tpu as pltpu

_BN_EPS = 1e-5
_LANE = 128                            # pad every output-feature dim to a multiple of this
_VMEM_SOFT_LIMIT = 12 * 1024 * 1024    # stay under the smallest scoped-VMEM default (v5e: 16 MiB)


def _round_up(v, m):
    return ((v + m - 1) // m) * m


def _bn_scale_shift(y, gamma, beta, inv_n):
    """Training-mode BatchNorm1d folded into y * s + t.

    Two-pass (center-then-square) variance for numerical robustness.  The Linear bias is
    omitted upstream: BN subtracts the batch mean so it cancels exactly (training mode only).
    Every row of `y` is a real batch row (batch is not padded), so plain sums / n are exact.
    Padded feature columns stay exactly 0 (zero-padded weights and gamma/beta).
    """
    mean = jnp.sum(y, axis=0, keepdims=True) * inv_n
    d = y - mean
    var = jnp.sum(d * d, axis=0, keepdims=True) * inv_n
    s = gamma * jax.lax.rsqrt(var + _BN_EPS)
    t = beta - mean * s
    return y * s + t


def _bigblock_kernel_proj(x_ref, wcat_ref, w2_ref, bn1_ref, bn2_ref, o_ref, *, hid_p):
    """in_dim != out_dim: identity branch is Linear -> BN (fused with the W1 matmul)."""
    n = x_ref.shape[0]
    inv_n = 1.0 / float(n)

    x = x_ref[...].astype(jnp.bfloat16)                                # (n, in_dim)
    # fused x @ [W1 | Wi] -> one MXU pass for both x-consuming matmuls
    y = jnp.dot(x, wcat_ref[...], preferred_element_type=jnp.float32)  # (n, hid_p+out_p) f32
    y1 = y[:, :hid_p]
    yi = y[:, hid_p:]

    bn1 = bn1_ref[...]   # (2, hid_p): [gamma1, beta1]
    bn2 = bn2_ref[...]   # (4, out_p): [gamma2, beta2, gamma_id, beta_id]

    # SmallBlock(in, hid): Linear -> BN -> ReLU
    h = jnp.maximum(_bn_scale_shift(y1, bn1[0:1, :], bn1[1:2, :], inv_n), 0.0)

    # SmallBlock(hid, out, activation=False): Linear -> BN
    # (K = hid_p = 128 only half-fills the 256-wide v6e/v7x MXU; fine at these sizes.)
    y2 = jnp.dot(h.astype(jnp.bfloat16), w2_ref[...], preferred_element_type=jnp.float32)
    h2 = _bn_scale_shift(y2, bn2[0:1, :], bn2[1:2, :], inv_n)

    # identity branch: Linear -> BN
    idn = _bn_scale_shift(yi, bn2[2:3, :], bn2[3:4, :], inv_n)

    o_ref[...] = jnp.maximum(h2 + idn, 0.0).astype(o_ref.dtype)


def _bigblock_kernel_identity(x_ref, w1_ref, w2_ref, bn1_ref, bn2_ref, o_ref, xpad_ref):
    """in_dim == out_dim: identity branch is literally x."""
    n, in_dim = x_ref.shape
    inv_n = 1.0 / float(n)

    x = x_ref[...].astype(jnp.float32)                                 # (n, in_dim)
    y1 = jnp.dot(x.astype(jnp.bfloat16), w1_ref[...], preferred_element_type=jnp.float32)

    bn1 = bn1_ref[...]   # (2, hid_p)
    bn2 = bn2_ref[...]   # (2, out_p)

    h = jnp.maximum(_bn_scale_shift(y1, bn1[0:1, :], bn1[1:2, :], inv_n), 0.0)

    y2 = jnp.dot(h.astype(jnp.bfloat16), w2_ref[...], preferred_element_type=jnp.float32)
    h2 = _bn_scale_shift(y2, bn2[0:1, :], bn2[1:2, :], inv_n)

    # Place the unpadded x into the lane-padded output width via a VMEM scratch so the final
    # store stays lane-dense/unmasked; padded columns remain exactly 0.
    xpad_ref[...] = jnp.zeros_like(xpad_ref)
    xpad_ref[:, :in_dim] = x
    o_ref[...] = jnp.maximum(h2 + xpad_ref[...], 0.0).astype(o_ref.dtype)


def _full_spec(shape):
    nd = len(shape)
    return pl.BlockSpec(shape, lambda *_: (0,) * nd)


def prepare_params(params, *, in_dim, hid_dim, out_dim):
    """One-time host-side parameter preparation (hoisted out of the per-call path).

    Pads output-feature dims to 128-lane multiples, casts weights to bf16 for the MXU,
    fuses [W1 | Wi] into one concatenated weight, and packs BN gamma/beta into two small
    2-D arrays (so the kernel gets 5 input refs, not 13).  Call once per parameter update
    and reuse the result for every forward call.
    """
    hid_p = _round_up(hid_dim, _LANE)
    out_p = _round_up(out_dim, _LANE)

    def pad2(w, r, c):
        return jnp.zeros((r, c), jnp.float32).at[: w.shape[0], : w.shape[1]].set(w)

    def pad1(v, c):
        return jnp.zeros((c,), jnp.float32).at[: v.shape[0]].set(v)

    w1p = pad2(params["w1"], in_dim, hid_p)                         # K kept at true in_dim
    w2p = pad2(params["w2"], hid_p, out_p).astype(jnp.bfloat16)
    bn1 = jnp.stack([pad1(params["g1"], hid_p), pad1(params["be1"], hid_p)])     # (2, hid_p)

    prepped = {"w2": w2p, "bn1": bn1}
    if in_dim != out_dim:
        wip = pad2(params["wi"], in_dim, out_p)
        prepped["wcat"] = jnp.concatenate([w1p, wip], axis=1).astype(jnp.bfloat16)
        prepped["bn2"] = jnp.stack([
            pad1(params["g2"], out_p), pad1(params["be2"], out_p),
            pad1(params["gi"], out_p), pad1(params["bei"], out_p)])              # (4, out_p)
    else:
        prepped["w1"] = w1p.astype(jnp.bfloat16)
        prepped["bn2"] = jnp.stack([pad1(params["g2"], out_p), pad1(params["be2"], out_p)])
    return jax.block_until_ready(prepped)   # materialize once; nothing above re-runs per call


@functools.partial(jax.jit, static_argnames=("out_dim", "out_dtype"))
def _bigblock_forward_impl(x, prepped, *, out_dim, out_dtype):
    n, in_dim = x.shape
    hid_p = prepped["bn1"].shape[1]
    out_p = prepped["bn2"].shape[1]
    is_proj = "wcat" in prepped

    if is_proj:
        args = (x, prepped["wcat"], prepped["w2"], prepped["bn1"], prepped["bn2"])
        kernel = functools.partial(_bigblock_kernel_proj, hid_p=hid_p)
        scratch_shapes = ()
        flops = 2 * n * (in_dim * (hid_p + out_p) + hid_p * out_p)
        transcendentals = hid_p + 2 * out_p
    else:
        args = (x, prepped["w1"], prepped["w2"], prepped["bn1"], prepped["bn2"])
        kernel = _bigblock_kernel_identity
        scratch_shapes = (pltpu.VMEM((n, out_p), jnp.float32),)
        flops = 2 * n * (in_dim * hid_p + hid_p * out_p)
        transcendentals = hid_p + out_p

    in_bytes = sum(int(a.size) * a.dtype.itemsize for a in args)
    out_bytes = n * out_p * np.dtype(out_dtype).itemsize
    cost = pl.CostEstimate(flops=int(flops), transcendentals=int(transcendentals),
                           bytes_accessed=int(in_bytes + out_bytes))

    # Single-program kernel: inputs, output and activations are all VMEM-resident with no
    # pipelining.  Refuse clearly-oversized batches rather than OOM-ing at compile time.
    # TODO(synk): batch-tiled multi-pass grid (stats pass -> apply pass) for larger batches.
    act_bytes = n * (hid_p + out_p) * 4 * 3
    if in_bytes + out_bytes + act_bytes > _VMEM_SOFT_LIMIT:
        raise NotImplementedError(
            "BigBlock batch too large for the single-tile fused kernel; "
            "a batch-tiled multi-pass variant is required.")

    out_padded = pl.pallas_call(
        kernel,
        out_shape=jax.ShapeDtypeStruct((n, out_p), out_dtype),
        in_specs=[_full_spec(a.shape) for a in args],
        out_specs=_full_spec((n, out_p)),
        scratch_shapes=scratch_shapes,
        cost_estimate=cost,
    )(*args)

    return out_padded[:, :out_dim]


def bigblock_forward(x, prepped, *, out_dim, out_dtype=jnp.float32):
    """Fused BigBlock forward.  `prepped` comes from prepare_params().

    out_dtype=jnp.bfloat16 halves the output writeback bytes (mainly a v5e win) at a small,
    bounded precision cost; default stays f32.
    """
    if x.shape[0] == 0:   # avoid 1/0 in the BN batch statistics
        return jnp.zeros((0, out_dim), out_dtype)
    return _bigblock_forward_impl(x, prepped, out_dim=out_dim, out_dtype=out_dtype)


def init_params(key, in_dim, hid_dim, out_dim):
    """Deterministic parameter init mimicking PyTorch defaults.

    Linear: weight, bias ~ U(-1/sqrt(fan_in), 1/sqrt(fan_in)); stored as (fan_in, fan_out).
    BatchNorm1d: gamma = 1, beta = 0.  Biases are kept for fidelity with the PyTorch module,
    but the kernel omits them (they cancel against the training-mode BN mean subtraction).
    """
    ks = jax.random.split(key, 6)

    def linear(kw, kb, fan_in, fan_out):
        bound = 1.0 / jnp.sqrt(jnp.float32(fan_in))
        w = jax.random.uniform(kw, (fan_in, fan_out), jnp.float32, -bound, bound)
        b = jax.random.uniform(kb, (fan_out,), jnp.float32, -bound, bound)
        return w, b

    w1, b1 = linear(ks[0], ks[1], in_dim, hid_dim)
    w2, b2 = linear(ks[2], ks[3], hid_dim, out_dim)
    params = {
        "w1": w1, "b1": b1,
        "g1": jnp.ones((hid_dim,), jnp.float32), "be1": jnp.zeros((hid_dim,), jnp.float32),
        "w2": w2, "b2": b2,
        "g2": jnp.ones((out_dim,), jnp.float32), "be2": jnp.zeros((out_dim,), jnp.float32),
    }
    if in_dim != out_dim:
        wi, bi = linear(ks[4], ks[5], in_dim, out_dim)
        params.update({
            "wi": wi, "bi": bi,
            "gi": jnp.ones((out_dim,), jnp.float32), "bei": jnp.zeros((out_dim,), jnp.float32),
        })
    return params


def bigblock_reference(x, params, in_dim, out_dim):
    """Pure-JAX f32 reference of the PyTorch forward (training-mode BN, with biases)."""
    def bn(y, g, b):
        m = jnp.mean(y, axis=0, keepdims=True)
        v = jnp.mean((y - m) ** 2, axis=0, keepdims=True)
        return g * (y - m) / jnp.sqrt(v + _BN_EPS) + b

    h = bn(x @ params["w1"] + params["b1"], params["g1"], params["be1"])
    h = jnp.maximum(h, 0.0)
    h2 = bn(h @ params["w2"] + params["b2"], params["g2"], params["be2"])
    if in_dim != out_dim:
        idn = bn(x @ params["wi"] + params["bi"], params["gi"], params["bei"])
    else:
        idn = x
    return jnp.maximum(h2 + idn, 0.0)


if __name__ == "__main__":
    key = jax.random.PRNGKey(0)
    k_x, k_p, k_x2, k_p2 = jax.random.split(key, 4)

    # --- projection path: in_dim != out_dim --------------------------------------------
    batch, in_dim, hid_dim, out_dim = 8, 32, 64, 48
    x = jax.random.normal(k_x, (batch, in_dim), jnp.float32)
    params = init_params(k_p, in_dim, hid_dim, out_dim)
    prepped = prepare_params(params, in_dim=in_dim, hid_dim=hid_dim, out_dim=out_dim)

    out = jax.block_until_ready(bigblock_forward(x, prepped, out_dim=out_dim))
    ref = bigblock_reference(x, params, in_dim, out_dim)
    assert out.shape == (batch, out_dim)
    err = float(jnp.max(jnp.abs(out - ref)))
    # matmuls run in bf16 on the MXU (f32 accumulation) -> loose tolerance vs pure-f32 ref.
    assert jnp.allclose(out, ref, atol=5e-2, rtol=5e-2), (
        f"projection path mismatch vs JAX reference (max abs err = {err})")

    # --- identity path: in_dim == out_dim ------------------------------------------------
    batch2, in_dim2, hid_dim2, out_dim2 = 8, 48, 64, 48
    x2 = jax.random.normal(k_x2, (batch2, in_dim2), jnp.float32)
    params2 = init_params(k_p2, in_dim2, hid_dim2, out_dim2)
    prepped2 = prepare_params(params2, in_dim=in_dim2, hid_dim=hid_dim2, out_dim=out_dim2)

    out2 = jax.block_until_ready(bigblock_forward(x2, prepped2, out_dim=out_dim2))
    ref2 = bigblock_reference(x2, params2, in_dim2, out_dim2)
    assert out2.shape == (batch2, out_dim2)
    err2 = float(jnp.max(jnp.abs(out2 - ref2)))
    assert jnp.allclose(out2, ref2, atol=5e-2, rtol=5e-2), (
        f"identity path mismatch vs JAX reference (max abs err = {err2})")

    print("KERNEL_OK")
</pallas_src>

<mosaic_0001>
module attributes {stable_mosaic.version = 11 : i64} {
  func.func @_bigblock_kernel_proj(%arg0: memref<8x32xf32, #tpu.memory_space<vmem>>, %arg1: memref<32x256xbf16, #tpu.memory_space<vmem>>, %arg2: memref<128x128xbf16, #tpu.memory_space<vmem>>, %arg3: memref<2x128xf32, #tpu.memory_space<vmem>>, %arg4: memref<4x128xf32, #tpu.memory_space<vmem>>, %arg5: memref<8x128xf32, #tpu.memory_space<vmem>>) attributes {dimension_semantics = [], scalar_prefetch = 0 : i64, scratch_operands = 0 : i64, tpu.core_type = #tpu.core_type<tc>} {
    %c0 = arith.constant 0 : index
    %c0_0 = arith.constant 0 : index
    %0 = vector.load %arg0[%c0, %c0_0] : memref<8x32xf32, #tpu.memory_space<vmem>>, vector<8x32xf32>
    %1 = arith.truncf %0 : vector<8x32xf32> to vector<8x32xbf16>
    %c0_1 = arith.constant 0 : index
    %c0_2 = arith.constant 0 : index
    %2 = vector.load %arg1[%c0_1, %c0_2] : memref<32x256xbf16, #tpu.memory_space<vmem>>, vector<32x256xbf16>
    %cst = arith.constant dense<0.000000e+00> : vector<8x256xf32>
    %3 = tpu.matmul %1, %2, %cst {dimension_numbers = #tpu.dot_dimension_numbers<[1], [0], [0], [1], [0, 0, 1, 1], [], []>} : vector<8x32xbf16>, vector<32x256xbf16>, vector<8x256xf32> -> vector<8x256xf32>
    %4 = vector.extract_strided_slice %3 {offsets = [0, 0], sizes = [8, 128], strides = [1, 1]} : vector<8x256xf32> to vector<8x128xf32>
    %5 = vector.extract_strided_slice %3 {offsets = [0, 128], sizes = [8, 128], strides = [1, 1]} : vector<8x256xf32> to vector<8x128xf32>
    %c0_3 = arith.constant 0 : index
    %c0_4 = arith.constant 0 : index
    %6 = vector.load %arg3[%c0_3, %c0_4] : memref<2x128xf32, #tpu.memory_space<vmem>>, vector<2x128xf32>
    %c0_5 = arith.constant 0 : index
    %c0_6 = arith.constant 0 : index
    %7 = vector.load %arg4[%c0_5, %c0_6] : memref<4x128xf32, #tpu.memory_space<vmem>>, vector<4x128xf32>
    %8 = vector.extract_strided_slice %6 {offsets = [0, 0], sizes = [1, 128], strides = [1, 1]} : vector<2x128xf32> to vector<1x128xf32>
    %9 = vector.extract_strided_slice %6 {offsets = [1, 0], sizes = [1, 128], strides = [1, 1]} : vector<2x128xf32> to vector<1x128xf32>
    %cst_7 = arith.constant dense<0.000000e+00> : vector<128xf32>
    %10 = vector.multi_reduction <add>, %4, %cst_7 [0] : vector<8x128xf32> to vector<128xf32>
    %11 = vector.shape_cast %10 : vector<128xf32> to vector<1x128xf32>
    %cst_8 = arith.constant 1.250000e-01 : f32
    %12 = vector.broadcast %cst_8 : f32 to vector<1x128xf32>
    %13 = arith.mulf %11, %12 : vector<1x128xf32>
    %14 = vector.broadcast %13 : vector<1x128xf32> to vector<8x128xf32>
    %15 = arith.subf %4, %14 : vector<8x128xf32>
    %16 = arith.mulf %15, %15 : vector<8x128xf32>
    %cst_9 = arith.constant dense<0.000000e+00> : vector<128xf32>
    %17 = vector.multi_reduction <add>, %16, %cst_9 [0] : vector<8x128xf32> to vector<128xf32>
    %18 = vector.shape_cast %17 : vector<128xf32> to vector<1x128xf32>
    %cst_10 = arith.constant 1.250000e-01 : f32
    %19 = vector.broadcast %cst_10 : f32 to vector<1x128xf32>
    %20 = arith.mulf %18, %19 : vector<1x128xf32>
    %cst_11 = arith.constant 9.99999974E-6 : f32
    %21 = vector.broadcast %cst_11 : f32 to vector<1x128xf32>
    %22 = arith.addf %20, %21 : vector<1x128xf32>
    %23 = math.rsqrt %22 : vector<1x128xf32>
    %24 = arith.mulf %8, %23 : vector<1x128xf32>
    %25 = arith.mulf %13, %24 : vector<1x128xf32>
    %26 = arith.subf %9, %25 : vector<1x128xf32>
    %27 = vector.broadcast %24 : vector<1x128xf32> to vector<8x128xf32>
    %28 = arith.mulf %4, %27 : vector<8x128xf32>
    %29 = vector.broadcast %26 : vector<1x128xf32> to vector<8x128xf32>
    %30 = arith.addf %28, %29 : vector<8x128xf32>
    %cst_12 = arith.constant 0.000000e+00 : f32
    %31 = vector.broadcast %cst_12 : f32 to vector<8x128xf32>
    %32 = arith.maximumf %30, %31 : vector<8x128xf32>
    %33 = arith.truncf %32 : vector<8x128xf32> to vector<8x128xbf16>
    %c0_13 = arith.constant 0 : index
    %c0_14 = arith.constant 0 : index
    %34 = vector.load %arg2[%c0_13, %c0_14] : memref<128x128xbf16, #tpu.memory_space<vmem>>, vector<128x128xbf16>
    %cst_15 = arith.constant dense<0.000000e+00> : vector<8x128xf32>
    %35 = tpu.matmul %33, %34, %cst_15 {dimension_numbers = #tpu.dot_dimension_numbers<[1], [0], [0], [1], [0, 0, 1, 1], [], []>} : vector<8x128xbf16>, vector<128x128xbf16>, vector<8x128xf32> -> vector<8x128xf32>
    %36 = vector.extract_strided_slice %7 {offsets = [0, 0], sizes = [1, 128], strides = [1, 1]} : vector<4x128xf32> to vector<1x128xf32>
    %37 = vector.extract_strided_slice %7 {offsets = [1, 0], sizes = [1, 128], strides = [1, 1]} : vector<4x128xf32> to vector<1x128xf32>
    %cst_16 = arith.constant dense<0.000000e+00> : vector<128xf32>
    %38 = vector.multi_reduction <add>, %35, %cst_16 [0] : vector<8x128xf32> to vector<128xf32>
    %39 = vector.shape_cast %38 : vector<128xf32> to vector<1x128xf32>
    %cst_17 = arith.constant 1.250000e-01 : f32
    %40 = vector.broadcast %cst_17 : f32 to vector<1x128xf32>
    %41 = arith.mulf %39, %40 : vector<1x128xf32>
    %42 = vector.broadcast %41 : vector<1x128xf32> to vector<8x128xf32>
    %43 = arith.subf %35, %42 : vector<8x128xf32>
    %44 = arith.mulf %43, %43 : vector<8x128xf32>
    %cst_18 = arith.constant dense<0.000000e+00> : vector<128xf32>
    %45 = vector.multi_reduction <add>, %44, %cst_18 [0] : vector<8x128xf32> to vector<128xf32>
    %46 = vector.shape_cast %45 : vector<128xf32> to vector<1x128xf32>
    %cst_19 = arith.constant 1.250000e-01 : f32
    %47 = vector.broadcast %cst_19 : f32 to vector<1x128xf32>
    %48 = arith.mulf %46, %47 : vector<1x128xf32>
    %cst_20 = arith.constant 9.99999974E-6 : f32
    %49 = vector.broadcast %cst_20 : f32 to vector<1x128xf32>
    %50 = arith.addf %48, %49 : vector<1x128xf32>
    %51 = math.rsqrt %50 : vector<1x128xf32>
    %52 = arith.mulf %36, %51 : vector<1x128xf32>
    %53 = arith.mulf %41, %52 : vector<1x128xf32>
    %54 = arith.subf %37, %53 : vector<1x128xf32>
    %55 = vector.broadcast %52 : vector<1x128xf32> to vector<8x128xf32>
    %56 = arith.mulf %35, %55 : vector<8x128xf32>
    %57 = vector.broadcast %54 : vector<1x128xf32> to vector<8x128xf32>
    %58 = arith.addf %56, %57 : vector<8x128xf32>
    %59 = vector.extract_strided_slice %7 {offsets = [2, 0], sizes = [1, 128], strides = [1, 1]} : vector<4x128xf32> to vector<1x128xf32>
    %60 = vector.extract_strided_slice %7 {offsets = [3, 0], sizes = [1, 128], strides = [1, 1]} : vector<4x128xf32> to vector<1x128xf32>
    %cst_21 = arith.constant dense<0.000000e+00> : vector<128xf32>
    %61 = vector.multi_reduction <add>, %5, %cst_21 [0] : vector<8x128xf32> to vector<128xf32>
    %62 = vector.shape_cast %61 : vector<128xf32> to vector<1x128xf32>
    %cst_22 = arith.constant 1.250000e-01 : f32
    %63 = vector.broadcast %cst_22 : f32 to vector<1x128xf32>
    %64 = arith.mulf %62, %63 : vector<1x128xf32>
    %65 = vector.broadcast %64 : vector<1x128xf32> to vector<8x128xf32>
    %66 = arith.subf %5, %65 : vector<8x128xf32>
    %67 = arith.mulf %66, %66 : vector<8x128xf32>
    %cst_23 = arith.constant dense<0.000000e+00> : vector<128xf32>
    %68 = vector.multi_reduction <add>, %67, %cst_23 [0] : vector<8x128xf32> to vector<128xf32>
    %69 = vector.shape_cast %68 : vector<128xf32> to vector<1x128xf32>
    %cst_24 = arith.constant 1.250000e-01 : f32
    %70 = vector.broadcast %cst_24 : f32 to vector<1x128xf32>
    %71 = arith.mulf %69, %70 : vector<1x128xf32>
    %cst_25 = arith.constant 9.99999974E-6 : f32
    %72 = vector.broadcast %cst_25 : f32 to vector<1x128xf32>
    %73 = arith.addf %71, %72 : vector<1x128xf32>
    %74 = math.rsqrt %73 : vector<1x128xf32>
    %75 = arith.mulf %59, %74 : vector<1x128xf32>
    %76 = arith.mulf %64, %75 : vector<1x128xf32>
    %77 = arith.subf %60, %76 : vector<1x128xf32>
    %78 = vector.broadcast %75 : vector<1x128xf32> to vector<8x128xf32>
    %79 = arith.mulf %5, %78 : vector<8x128xf32>
    %80 = vector.broadcast %77 : vector<1x128xf32> to vector<8x128xf32>
    %81 = arith.addf %79, %80 : vector<8x128xf32>
    %82 = arith.addf %58, %81 : vector<8x128xf32>
    %cst_26 = arith.constant 0.000000e+00 : f32
    %83 = vector.broadcast %cst_26 : f32 to vector<8x128xf32>
    %84 = arith.maximumf %82, %83 : vector<8x128xf32>
    %c0_27 = arith.constant 0 : index
    %c0_28 = arith.constant 0 : index
    %85 = vector.load %arg5[%c0_27, %c0_28] : memref<8x128xf32, #tpu.memory_space<vmem>>, vector<8x128xf32>
    tpu.vector_store %arg5[%c0_27, %c0_28], %84 {strides = array<i32>} : memref<8x128xf32, #tpu.memory_space<vmem>>, vector<8x128xf32>,
    return
  }
}

</mosaic_0001>

<llo_original>
// kernel: _bigblock_forward_impl.1
$region0: #{_bigblock_forward_impl.1}
  #allocation0 [shape = 'u32[]', space=smem, size = 0x4, offset = 0x4, fixed_abs, tag = 'smem constant byte address 0x4 - core index']
  #allocation1 [shape = 'u32[144,128]{1,0:T(1,128)}', space=vmem, size = 0x12000, scoped, tag = 'internal scratch']
  %s0 = inlined_call_operand.hbm [shape: f32[8,32], index: 0, kind: input, shape index: {}]
  %s1 = inlined_call_operand.hbm [shape: bf16[32,256], index: 1, kind: input, shape index: {}]
  %s2 = inlined_call_operand.hbm [shape: bf16[128,128], index: 2, kind: input, shape index: {}]
  %s3 = inlined_call_operand.vmem [shape: f32[2,128], index: 3, kind: input, shape index: {}]
  %s4 = inlined_call_operand.vmem [shape: f32[4,128], index: 4, kind: input, shape index: {}]
  %s5 = inlined_call_operand.hbm [shape: f32[8,128], index: 5, kind: output, shape index: {}]
  %s6 = sld [smem:[#allocation0]]
  $region42: #{_bigblock_forward_impl.1} parent=0
    _
  %s8 = ssub.s32 1, %s6
  %s9 = scalar_select 0, %s8, %s6
  $region1: #{_bigblock_forward_impl.1} parent=0
    #allocation2 [shape = 'u8[4096]{0}', space=vmem, size = 0x1000, scoped, tag = 'input window, operand 0, single buffered']
    #allocation3 [shape = 's32[1]{0}', space=sflag, size = 0x4, scoped, tag = 'scoped memory for _bigblock_forward_impl.1']
    #allocation4 [shape = 's32[1]{0}', space=sflag, size = 0x4, scoped, tag = 'scoped memory for _bigblock_forward_impl.1']
    #allocation5 [shape = 'u8[16384]{0}', space=vmem, size = 0x4000, scoped, tag = 'input window, operand 1, single buffered']
    #allocation6 [shape = 's32[1]{0}', space=sflag, size = 0x4, scoped, tag = 'scoped memory for _bigblock_forward_impl.1']
    #allocation7 [shape = 'u8[32768]{0}', space=vmem, size = 0x8000, scoped, tag = 'input window, operand 2, single buffered']
    #allocation8 [shape = 'u8[4096]{0}', space=vmem, size = 0x1000, scoped, tag = 'output window, operand 0, single buffered']
    %10 = vsyncpa [#allocation3], 0
    %11 = vsyncpa [#allocation6], 0
    %12 = vsyncpa [#allocation4], 0
    // Predicated region
    $region2: #{_bigblock_forward_impl.1} parent=1 // pred_check
      _
    $region3: #{_bigblock_forward_impl.1} parent=1 // pred_check_branch
      %14 = sbr.rel (0) target = $region5
    $region4: #{_bigblock_forward_impl.1} parent=1 // pred_region
      %s16 = ssub.s32 128, 128
      %17 = vsyncadd [#allocation3], %s16
      %s19 = sshll.u32 [#allocation2], 4
      %s20 = int_to_ptr.vmem [resolvable:$true] %s19
      %22 = dma.hbm_to_vmem [thread:$0]  %s0, 128, %s20, [#allocation3]
    $region5: #{_bigblock_forward_impl.1} parent=1 // pred_fallthru
      _
    // Predicated region
    $region6: #{_bigblock_forward_impl.1} parent=1 // pred_check
      _
    $region7: #{_bigblock_forward_impl.1} parent=1 // pred_check_branch
      %24 = sbr.rel (0) target = $region9
    $region8: #{_bigblock_forward_impl.1} parent=1 // pred_region
      %s26 = ssub.s32 512, 512
      %27 = vsyncadd [#allocation6], %s26
      %s28 = sshll.u32 [#allocation5], 4
      %s29 = int_to_ptr.vmem [resolvable:$true] %s28
      %34 = dma.hbm_to_vmem [thread:$0]  %s1, 512, %s29, [#allocation6], 128, 128, 8
    $region9: #{_bigblock_forward_impl.1} parent=1 // pred_fallthru
      _
    // Predicated region
    $region10: #{_bigblock_forward_impl.1} parent=1 // pred_check
      _
    $region11: #{_bigblock_forward_impl.1} parent=1 // pred_check_branch
      %36 = sbr.rel (0) target = $region13
    $region12: #{_bigblock_forward_impl.1} parent=1 // pred_region
      %s38 = ssub.s32 1024, 1024
      %39 = vsyncadd [#allocation6], %s38
      %s40 = sshll.u32 [#allocation7], 4
      %s41 = int_to_ptr.vmem [resolvable:$true] %s40
      %46 = dma.hbm_to_vmem [thread:$0]  %s2, 1024, %s41, [#allocation6], 64, 64, 4
    $region13: #{_bigblock_forward_impl.1} parent=1 // pred_fallthru
      _
    // Predicated region
    $region14: #{_bigblock_forward_impl.1} parent=1 // pred_check
      _
    $region15: #{_bigblock_forward_impl.1} parent=1 // pred_check_branch
      %48 = sbr.rel (0) target = $region17
    $region16: #{_bigblock_forward_impl.1} parent=1 // pred_region
      _
    $region17: #{_bigblock_forward_impl.1} parent=1 // pred_fallthru
      _
    // Predicated region
    $region18: #{_bigblock_forward_impl.1} parent=1 // pred_check
      _
    $region19: #{_bigblock_forward_impl.1} parent=1 // pred_check_branch
      %50 = sbr.rel (0) target = $region21
    $region20: #{_bigblock_forward_impl.1} parent=1 // pred_region
      _
    $region21: #{_bigblock_forward_impl.1} parent=1 // pred_fallthru
      _
    // Predicated region
    $region22: #{_bigblock_forward_impl.1} parent=1 // pred_check
      _
    $region23: #{_bigblock_forward_impl.1} parent=1 // pred_check_branch
      %52 = sbr.rel (0) target = $region25
    $region24: #{_bigblock_forward_impl.1} parent=1 // pred_region
      %53 = dma.done [#allocation3], 128
    $region25: #{_bigblock_forward_impl.1} parent=1 // pred_fallthru
      _
    // Predicated region
    $region26: #{_bigblock_forward_impl.1} parent=1 // pred_check
      _
    $region27: #{_bigblock_forward_impl.1} parent=1 // pred_check_branch
      %55 = sbr.rel (0) target = $region29
    $region28: #{_bigblock_forward_impl.1} parent=1 // pred_region
      %56 = dma.done [#allocation6], 512
    $region29: #{_bigblock_forward_impl.1} parent=1 // pred_fallthru
      _
    // Predicated region
    $region30: #{_bigblock_forward_impl.1} parent=1 // pred_check
      _
    $region31: #{_bigblock_forward_impl.1} parent=1 // pred_check_branch
      %58 = sbr.rel (0) target = $region33
    $region32: #{_bigblock_forward_impl.1} parent=1 // pred_region
      %59 = dma.done [#allocation6], 1024
    $region33: #{_bigblock_forward_impl.1} parent=1 // pred_fallthru
      _
    %v61 = vld [vmem:[#allocation2] sm:$0xff]
    %v62 = vpack.c.bf16 %v61, %v61
    %v63 = vld [vmem:[#allocation5] sm:$0xff]
    %v64 = vld [vmem:[#allocation5 + $0x8] sm:$0xff]
    %v65 = vld [vmem:[#allocation5 + $0x10] sm:$0xff]
    %v66 = vld [vmem:[#allocation5 + $0x18] sm:$0xff]
    %v71 = vunpack.c.l.b16 %v63
    %v72 = vunpack.c.h.b16 %v63
    %v73 = vunpack.c.l.b16 %v64
    %v74 = vunpack.c.h.b16 %v64
    %v75 = vunpack.c.l.b16 %v65
    %v76 = vunpack.c.h.b16 %v65
    %v77 = vunpack.c.l.b16 %v66
    %v78 = vunpack.c.h.b16 %v66
    %v79 = vpack.c.b16 %v73, %v71
    %v80 = vpack.c.b16 %v74, %v72
    %v81 = vpack.c.b16 %v77, %v75
    %v82 = vpack.c.b16 %v78, %v76
    %vm87 = vcmask 261120
    %v89 = vsel %vm87, %v62, 0
    %91 = vmatprep.subr.bf16.mxu0 %v80
    %92 = vmatpush1.bf16.msra.mxu0 %v79
    %93 = vmatprep.subr.bf16.mxu0 %v82
    %94 = vmatpush1.bf16.msra.mxu0 %v81
    %95 = vmatprep.subr.bf16.mxu0 0
    %96 = vmatpush1.bf16.msra.mxu0 0
    %97 = vmatprep.subr.bf16.mxu0 0
    %98 = vmatpush1.bf16.msra.mxu0 0
    %99 = vmatprep.subr.bf16.mxu0 0
    %100 = vmatpush1.bf16.msra.mxu0 0
    %101 = vmatprep.subr.bf16.mxu0 0
    %102 = vmatpush1.bf16.msra.mxu0 0
    %103 = vmatprep.subr.bf16.mxu0 0
    %104 = vmatpush1.bf16.msra.mxu0 0
    %105 = vmatprep.subr.bf16.mxu0 0
    %106 = vmatpush1.bf16.msra.mxu0 0
    %107 = vmatprep.subr.bf16.mxu0 0
    %108 = vmatpush1.bf16.msra.mxu0 0
    %109 = vmatprep.subr.bf16.mxu0 0
    %110 = vmatpush1.bf16.msra.mxu0 0
    %111 = vmatprep.subr.bf16.mxu0 0
    %112 = vmatpush1.bf16.msra.mxu0 0
    %113 = vmatprep.subr.bf16.mxu0 0
    %114 = vmatpush1.bf16.msra.mxu0 0
    %115 = vmatprep.subr.bf16.mxu0 0
    %116 = vmatpush1.bf16.msra.mxu0 0
    %117 = vmatprep.subr.bf16.mxu0 0
    %118 = vmatpush1.bf16.msra.mxu0 0
    %119 = vmatprep.subr.bf16.mxu0 0
    %120 = vmatpush1.bf16.msra.mxu0 0
    %121 = vmatprep.subr.bf16.mxu0 0
    %122 = vmatpush1.bf16.msra.mxu0 0
    %123 = vmatprep.mubr.bf16.mxu0 0
    %124 = vmatmul.mubr.bf16.gmra.mrb[0].mxu0 %v89
    %v125 = vpop.f32.mrb[0].mxu0
    %v126 = vadd.f32 0.0, %v125
    %v127 = vpop.f32.mrb[0].mxu0
    %v128 = vadd.f32 0.0, %v127
    %v129 = vpop.f32.mrb[0].mxu0
    %v130 = vpop.f32.mrb[0].mxu0
    %131 = vdwg.mxu0
    %v132 = vld [vmem:[%s3] sm:$0x3]
    %v133 = vld [vmem:[%s4] sm:$0xf]
    %v134 = vrot.slane %v126, 4
    %v135 = vadd.f32 %v126, %v134
    %v136 = vrot.slane %v135, 2
    %v137 = vadd.f32 %v135, %v136
    %v138 = vrot.slane %v137, 1
    %v139 = vadd.f32 %v137, %v138
    %v140 = vmul.f32 %v139, 0.125
    %v141 = vsub.f32 %v126, %v140
    %v142 = vmul.f32 %v141, %v141
    %v143 = vrot.slane %v142, 4
    %v144 = vadd.f32 %v142, %v143
    %v145 = vrot.slane %v144, 2
    %v146 = vadd.f32 %v144, %v145
    %v147 = vrot.slane %v146, 1
    %v148 = vadd.f32 %v146, %v147
    %v149 = vmul.f32 %v148, 0.125
    %v150 = vadd.f32 %v149, 1e-05
    %v151 = vrsqrt.pop %v150
    %v152 = vmul.f32 %v132, %v151
    %v153 = vmul.f32 %v140, %v152
    %v155 = vrot.slane %v153, 7
    %v157 = vsub.f32 %v132, %v155
    %v158 = vlaneseq
    %v159 = vshrl.u32 %v158, 7
    %v160 = vsub.s32 0, %v159
    %v161 = vrot.slane %v152, %v160
    %v162 = vmul.f32 %v126, %v161
    %v163 = vlaneseq
    %v164 = vshrl.u32 %v163, 7
    %v165 = vsub.s32 1, %v164
    %v166 = vrot.slane %v157, %v165
    %v167 = vadd.f32 %v162, %v166
    %v168 = vmax.f32 %v167, 0.0
    %v169 = vpack.c.bf16 %v168, %v168
    %v170 = vld [vmem:[#allocation7] sm:$0xf]
    %v171 = vld [vmem:[#allocation7 + $0x4] sm:$0xf]
    %v172 = vld [vmem:[#allocation7 + $0x8] sm:$0xf]
    %v173 = vld [vmem:[#allocation7 + $0xc] sm:$0xf]
    %v174 = vld [vmem:[#allocation7 + $0x10] sm:$0xf]
    %v175 = vld [vmem:[#allocation7 + $0x14] sm:$0xf]
    %v176 = vld [vmem:[#allocation7 + $0x18] sm:$0xf]
    %v177 = vld [vmem:[#allocation7 + $0x1c] sm:$0xf]
    %v178 = vld [vmem:[#allocation7 + $0x20] sm:$0xf]
    %v179 = vld [vmem:[#allocation7 + $0x24] sm:$0xf]
    %v180 = vld [vmem:[#allocation7 + $0x28] sm:$0xf]
    %v181 = vld [vmem:[#allocation7 + $0x2c] sm:$0xf]
    %v182 = vld [vmem:[#allocation7 + $0x30] sm:$0xf]
    %v183 = vld [vmem:[#allocation7 + $0x34] sm:$0xf]
    %v184 = vld [vmem:[#allocation7 + $0x38] sm:$0xf]
    %v185 = vld [vmem:[#allocation7 + $0x3c] sm:$0xf]
    %v202 = vunpack.c.l.b16 %v170
    %v203 = vunpack.c.l.b16 %v171
    %v204 = vunpack.c.l.b16 %v172
    %v205 = vunpack.c.l.b16 %v173
    %v206 = vunpack.c.l.b16 %v174
    %v207 = vunpack.c.l.b16 %v175
    %v208 = vunpack.c.l.b16 %v176
    %v209 = vunpack.c.l.b16 %v177
    %v210 = vunpack.c.l.b16 %v178
    %v211 = vunpack.c.l.b16 %v179
    %v212 = vunpack.c.l.b16 %v180
    %v213 = vunpack.c.l.b16 %v181
    %v214 = vunpack.c.l.b16 %v182
    %v215 = vunpack.c.l.b16 %v183
    %v216 = vunpack.c.l.b16 %v184
    %v217 = vunpack.c.l.b16 %v185
    %v218 = vpack.c.b16 %v203, %v202
    %v219 = vpack.c.b16 %v205, %v204
    %v220 = vpack.c.b16 %v207, %v206
    %v221 = vpack.c.b16 %v209, %v208
    %v222 = vpack.c.b16 %v211, %v210
    %v223 = vpack.c.b16 %v213, %v212
    %v224 = vpack.c.b16 %v215, %v214
    %v225 = vpack.c.b16 %v217, %v216
    %234 = vmatprep.subr.bf16.mxu0 0
    %235 = vmatpush1.bf16.msra.mxu0 %v218
    %236 = vmatprep.subr.bf16.mxu0 0
    %237 = vmatpush1.bf16.msra.mxu0 %v219
    %238 = vmatprep.subr.bf16.mxu0 0
    %239 = vmatpush1.bf16.msra.mxu0 %v220
    %240 = vmatprep.subr.bf16.mxu0 0
    %241 = vmatpush1.bf16.msra.mxu0 %v221
    %242 = vmatprep.subr.bf16.mxu0 0
    %243 = vmatpush1.bf16.msra.mxu0 %v222
    %244 = vmatprep.subr.bf16.mxu0 0
    %245 = vmatpush1.bf16.msra.mxu0 %v223
    %246 = vmatprep.subr.bf16.mxu0 0
    %247 = vmatpush1.bf16.msra.mxu0 %v224
    %248 = vmatprep.subr.bf16.mxu0 0
    %249 = vmatpush1.bf16.msra.mxu0 %v225
    %250 = vmatprep.subr.bf16.mxu0 0
    %251 = vmatpush1.bf16.msra.mxu0 0
    %252 = vmatprep.subr.bf16.mxu0 0
    %253 = vmatpush1.bf16.msra.mxu0 0
    %254 = vmatprep.subr.bf16.mxu0 0
    %255 = vmatpush1.bf16.msra.mxu0 0
    %256 = vmatprep.subr.bf16.mxu0 0
    %257 = vmatpush1.bf16.msra.mxu0 0
    %258 = vmatprep.subr.bf16.mxu0 0
    %259 = vmatpush1.bf16.msra.mxu0 0
    %260 = vmatprep.subr.bf16.mxu0 0
    %261 = vmatpush1.bf16.msra.mxu0 0
    %262 = vmatprep.subr.bf16.mxu0 0
    %263 = vmatpush1.bf16.msra.mxu0 0
    %264 = vmatprep.subr.bf16.mxu0 0
    %265 = vmatpush1.bf16.msra.mxu0 0
    %266 = vmatprep.mubr.bf16.mxu0 0
    %267 = vmatmul.mubr.bf16.gmra.mrb[0].mxu0 %v169
    %v268 = vpop.f32.mrb[0].mxu0
    %v269 = vadd.f32 0.0, %v268
    %v270 = vpop.f32.mrb[0].mxu0
    %v271 = vpop.f32.mrb[0].mxu0
    %v272 = vpop.f32.mrb[0].mxu0
    %273 = vdwg.mxu0
    %v274 = vrot.slane %v269, 4
    %v275 = vadd.f32 %v269, %v274
    %v276 = vrot.slane %v275, 2
    %v277 = vadd.f32 %v275, %v276
    %v278 = vrot.slane %v277, 1
    %v279 = vadd.f32 %v277, %v278
    %v280 = vmul.f32 %v279, 0.125
    %v281 = vsub.f32 %v269, %v280
    %v282 = vmul.f32 %v281, %v281
    %v283 = vrot.slane %v282, 4
    %v284 = vadd.f32 %v282, %v283
    %v285 = vrot.slane %v284, 2
    %v286 = vadd.f32 %v284, %v285
    %v287 = vrot.slane %v286, 1
    %v288 = vadd.f32 %v286, %v287
    %v289 = vmul.f32 %v288, 0.125
    %v290 = vadd.f32 %v289, 1e-05
    %v291 = vrsqrt.pop %v290
    %v292 = vmul.f32 %v133, %v291
    %v293 = vmul.f32 %v280, %v292
    %v295 = vrot.slane %v293, 7
    %v297 = vsub.f32 %v133, %v295
    %v298 = vlaneseq
    %v299 = vshrl.u32 %v298, 7
    %v300 = vsub.s32 0, %v299
    %v301 = vrot.slane %v292, %v300
    %v302 = vmul.f32 %v269, %v301
    %v303 = vlaneseq
    %v304 = vshrl.u32 %v303, 7
    %v305 = vsub.s32 1, %v304
    %v306 = vrot.slane %v297, %v305
    %v307 = vadd.f32 %v302, %v306
    %v308 = vrot.slane %v128, 4
    %v309 = vadd.f32 %v128, %v308
    %v310 = vrot.slane %v309, 2
    %v311 = vadd.f32 %v309, %v310
    %v312 = vrot.slane %v311, 1
    %v313 = vadd.f32 %v311, %v312
    %v314 = vmul.f32 %v313, 0.125
    %v315 = vsub.f32 %v128, %v314
    %v316 = vmul.f32 %v315, %v315
    %v317 = vrot.slane %v316, 4
    %v318 = vadd.f32 %v316, %v317
    %v319 = vrot.slane %v318, 2
    %v320 = vadd.f32 %v318, %v319
    %v321 = vrot.slane %v320, 1
    %v322 = vadd.f32 %v320, %v321
    %v323 = vmul.f32 %v322, 0.125
    %v324 = vadd.f32 %v323, 1e-05
    %v325 = vrsqrt.pop %v324
    %v326 = vmul.f32 %v133, %v325
    %v327 = vmul.f32 %v314, %v326
    %v329 = vrot.slane %v327, 7
    %v331 = vsub.f32 %v133, %v329
    %v332 = vlaneseq
    %v333 = vshrl.u32 %v332, 7
    %v334 = vsub.s32 2, %v333
    %v335 = vrot.slane %v326, %v334
    %v336 = vmul.f32 %v128, %v335
    %v337 = vlaneseq
    %v338 = vshrl.u32 %v337, 7
    %v339 = vsub.s32 3, %v338
    %v340 = vrot.slane %v331, %v339
    %v341 = vadd.f32 %v336, %v340
    %v342 = vadd.f32 %v307, %v341
    %v343 = vmax.f32 %v342, 0.0
    %344 = vst [vmem:[#allocation8] sm:$0xff] %v343
    // Predicated region
    $region34: #{_bigblock_forward_impl.1} parent=1 // pred_check
      _
    $region35: #{_bigblock_forward_impl.1} parent=1 // pred_check_branch
      %346 = sbr.rel (0) target = $region37
    $region36: #{_bigblock_forward_impl.1} parent=1 // pred_region
      %s348 = ssub.s32 128, 128
      %349 = vsyncadd [#allocation4], %s348
      %s351 = sshll.u32 [#allocation8], 4
      %s352 = int_to_ptr.vmem [resolvable:$true] %s351
      %354 = dma.vmem_to_hbm [thread:$0]  %s352, 128, %s5, [#allocation4]
    $region37: #{_bigblock_forward_impl.1} parent=1 // pred_fallthru
      _
    // Predicated region
    $region38: #{_bigblock_forward_impl.1} parent=1 // pred_check
      _
    $region39: #{_bigblock_forward_impl.1} parent=1 // pred_check_branch
      %356 = sbr.rel (0) target = $region41
    $region40: #{_bigblock_forward_impl.1} parent=1 // pred_region
      %357 = dma.done [#allocation4], 128
    $region41: #{_bigblock_forward_impl.1} parent=1 // pred_fallthru
      _
    %358 = vsyncpa [#allocation3], 1
    %359 = vsyncpa [#allocation6], 1
    %360 = vsyncpa [#allocation4], 1

</llo_original>
